<compile_context>
chip_gen: v7x
topology: tpu7x:2x2x1
jax: 0.10.0
libtpu: 0.0.40
codegen_flags: <defaults>
</compile_context>

<pallas_src>
import jax
import jax.numpy as jnp
from jax.experimental import pallas as pl
from jax.experimental.pallas import tpu as pltpu


def _round_up(n, m):
    return ((n + m - 1) // m) * m


def _pick_group(n_cases, n_feat, kmax=64):
    """Pick the batch-packing factor k (k | n_cases, k <= kmax).

    k cases are packed per output row, making the lane axis k*n_feat wide.
    We maximize lane density (k*n_feat)/round_up(k*n_feat, 128); ties go to the
    smallest k (the MXU expansion work grows linearly with k)."""
    best_k, best_d = 1, n_feat / _round_up(n_feat, 128)
    for k in range(2, min(n_cases, kmax) + 1):
        if n_cases % k:
            continue
        lanes = k * n_feat
        d = lanes / _round_up(lanes, 128)
        if d > best_d + 1e-12:
            best_k, best_d = k, d
        if best_d > 1.0 - 1e-12:
            break
    return best_k


def _fuzzify_kernel(x_ref, e_ref, p_ref, y_ref):
    # x_ref: (tr, k*n_in)   f32   k cases per row, variables on lanes
    # e_ref: (k*n_in, k*F)  bf16  one-hot lane-expansion matrix (F = n_in*M)
    # p_ref: (3, k*F)       f32   [mu, -1/(2*sigma^2), mask], tiled k times
    # y_ref: (tr, k*F)            module-order output rows
    x = x_ref[...]

    # Exact f32 -> 3x bf16 split: the one-hot MXU expansion then reproduces x
    # to ~1 f32 ulp (each residual subtraction is exact by Sterbenz).
    a = x.astype(jnp.bfloat16)
    r = x - a.astype(jnp.float32)
    b = r.astype(jnp.bfloat16)
    c = (r - b.astype(jnp.float32)).astype(jnp.bfloat16)

    e = e_ref[...]
    xe = (jnp.dot(a, e, preferred_element_type=jnp.float32)
          + jnp.dot(b, e, preferred_element_type=jnp.float32)
          + jnp.dot(c, e, preferred_element_type=jnp.float32))     # x expanded to (tr, k*F)

    p = p_ref[...]
    mu, scale, mask = p[0:1, :], p[1:2, :], p[2:3, :]               # (1, k*F) sublane-broadcast
    d = xe - mu
    # Single EUP exp per element; the divide lives in `scale`; mask kills padded slots.
    y_ref[...] = (jnp.exp(d * d * scale) * mask).astype(y_ref.dtype)


def fuzzify(x, mu, sigma, mask, *, batch_tile=65536, out_dtype=None):
    """Pallas FuzzifyLayer forward.

    x:     (N, n_in) float32
    mu:    (n_in, M) float32
    sigma: (n_in, M) float32 (> 0 where mask == 1)
    mask:  (n_in, M) float32, 1.0 for real MFs, 0.0 for padded slots
    returns (N, n_in, M) in `out_dtype` (default: x.dtype), module layout.
    """
    N, n_in = x.shape
    M = mu.shape[1]
    F = n_in * M
    if out_dtype is None:
        out_dtype = x.dtype
    x = x.astype(jnp.float32)

    # scale = -1/(2*sigma^2); masked slots get a finite value so 0*exp(finite)=0 (NaN-free).
    scale = jnp.where(mask > 0, -0.5 / (sigma * sigma), 0.0).astype(jnp.float32)

    k = _pick_group(N, F)
    KN, KF, R = k * n_in, k * F, N // k

    # Parameters tiled k times along the packed-feature (lane) axis: p[:, j*F + f] = param[f].
    p = jnp.stack(
        [jnp.tile(mu.reshape(-1).astype(jnp.float32), k),
         jnp.tile(scale.reshape(-1), k),
         jnp.tile(mask.reshape(-1).astype(jnp.float32), k)],
        axis=0,
    )                                                               # (3, KF)

    # One-hot lane expansion: E[j*n_in + i, j*F + i*M + m] = 1 (exact in bf16).
    rows = jnp.arange(KN)
    cols = jnp.arange(KF)
    E = (((rows // n_in)[:, None] == (cols // F)[None, :])
         & ((rows % n_in)[:, None] == ((cols % F) // M)[None, :])).astype(jnp.bfloat16)

    # Free reshape (row-major): k consecutive cases per row, module order preserved.
    x2 = x.reshape(R, KN)

    # Row tile: ~batch_tile cases per grid step, sublane-aligned; cdiv grid handles
    # the ragged tail (no x padding, no output slice/copy).
    tr = (max(batch_tile // k, 8) // 8) * 8
    if tr >= R:
        tr = R
    grid = (pl.cdiv(R, tr),)

    itemsize_out = jnp.dtype(out_dtype).itemsize
    cost = pl.CostEstimate(
        flops=6 * R * KN * KF + 5 * N * F,          # 3 bf16 expansion passes + elementwise
        transcendentals=N * F,
        bytes_accessed=N * n_in * 4 + N * F * itemsize_out + KN * KF * 2 + 3 * KF * 4,
    )

    y2 = pl.pallas_call(
        _fuzzify_kernel,
        out_shape=jax.ShapeDtypeStruct((R, KF), out_dtype),
        grid_spec=pl.GridSpec(
            grid=grid,
            in_specs=[
                pl.BlockSpec((tr, KN), lambda r: (r, 0)),   # streamed batch rows
                pl.BlockSpec((KN, KF), lambda r: (0, 0)),   # resident expansion matrix
                pl.BlockSpec((3, KF), lambda r: (0, 0)),    # resident parameters
            ],
            out_specs=pl.BlockSpec((tr, KF), lambda r: (r, 0)),
            # NOTE: if xprof shows the write DMA still exposed, add
            # pipeline_mode=pl.Buffered(3) on the out spec.
        ),
        compiler_params=pltpu.CompilerParams(
            dimension_semantics=("parallel",),              # shard batch steps across TCs (v7x)
            vmem_limit_bytes=32 * 1024 * 1024,              # ~9 MiB used at default tile; headroom on v5e
        ),
        cost_estimate=cost,
    )(x2, E, p)

    # Free reshape back to the module's (n_cases, n_in, n_mfs) layout — no transpose, no slice.
    return y2.reshape(N, n_in, M)


def _reference(x, mu, sigma, mask):
    diff = x[:, :, None] - mu[None, :, :]
    return jnp.exp(-(diff * diff) / (2.0 * sigma * sigma)[None]) * mask[None]


if __name__ == "__main__":
    key = jax.random.PRNGKey(0)

    n_in, max_mfs = 4, 3

    # Deterministic Gaussian MF parameters (synthetic; no checkpoint load).
    # Variable 2 "really" has only 2 MFs -> third slot is padding (mask = 0).
    mu = jnp.stack(
        [jnp.linspace(-1.0 + 0.25 * i, 1.0 + 0.25 * i, max_mfs) for i in range(n_in)],
        axis=0,
    ).astype(jnp.float32)                                   # (n_in, M)
    sigma = (0.5 + 0.1 * jnp.arange(n_in, dtype=jnp.float32))[:, None] * jnp.ones(
        (n_in, max_mfs), jnp.float32
    )                                                       # (n_in, M), > 0 everywhere
    mask = jnp.ones((n_in, max_mfs), jnp.float32).at[2, 2].set(0.0)

    # Two configurations: (a) 128-multiple lane packing with a multi-step,
    # ragged grid; (b) a small batch exercising the adaptive packing fallback.
    for n_cases, tile in ((1120, 256), (80, 65536)):
        key, kx = jax.random.split(key)
        x = jax.random.normal(kx, (n_cases, n_in), dtype=jnp.float32)

        y = jax.block_until_ready(fuzzify(x, mu, sigma, mask, batch_tile=tile))
        y_ref = _reference(x, mu, sigma, mask)

        assert y.shape == (n_cases, n_in, max_mfs)
        assert jnp.allclose(y, y_ref, atol=1e-5, rtol=2e-5), "mismatch vs JAX reference"

    # TODO(synk): the module's `antec` / `__repr__` parameter bookkeeping is
    # host-side Python and intentionally not part of the kernel.
    print("KERNEL_OK")
</pallas_src>

<mosaic_0001>
module attributes {stable_mosaic.version = 11 : i64} {
  func.func @_fuzzify_kernel(%arg0: i32, %arg1: memref<8x128xf32, #tpu.memory_space<vmem>>, %arg2: memref<128x384xbf16, #tpu.memory_space<vmem>>, %arg3: memref<3x384xf32, #tpu.memory_space<vmem>>, %arg4: memref<8x384xf32, #tpu.memory_space<vmem>>) attributes {dimension_semantics = [#tpu.dimension_semantics<parallel>], iteration_bounds = array<i64: 5>, scalar_prefetch = 0 : i64, scratch_operands = 0 : i64, tpu.core_type = #tpu.core_type<tc>, window_params = [{transform_indices = @transform_0, window_bounds = array<i64: 8, 128>}, {pipeline_mode = #tpu.pipeline_mode<synchronous>, transform_indices = @transform_1, window_bounds = array<i64: 128, 384>}, {pipeline_mode = #tpu.pipeline_mode<synchronous>, transform_indices = @transform_2, window_bounds = array<i64: 3, 384>}, {transform_indices = @transform_3, window_bounds = array<i64: 8, 384>}]} {
    %c0 = arith.constant 0 : index
    %c0_0 = arith.constant 0 : index
    %0 = vector.load %arg1[%c0, %c0_0] : memref<8x128xf32, #tpu.memory_space<vmem>>, vector<8x128xf32>
    %1 = arith.truncf %0 : vector<8x128xf32> to vector<8x128xbf16>
    %2 = arith.extf %1 : vector<8x128xbf16> to vector<8x128xf32>
    %3 = arith.subf %0, %2 : vector<8x128xf32>
    %4 = arith.truncf %3 : vector<8x128xf32> to vector<8x128xbf16>
    %5 = arith.extf %4 : vector<8x128xbf16> to vector<8x128xf32>
    %6 = arith.subf %3, %5 : vector<8x128xf32>
    %7 = arith.truncf %6 : vector<8x128xf32> to vector<8x128xbf16>
    %c0_1 = arith.constant 0 : index
    %c0_2 = arith.constant 0 : index
    %8 = vector.load %arg2[%c0_1, %c0_2] : memref<128x384xbf16, #tpu.memory_space<vmem>>, vector<128x384xbf16>
    %cst = arith.constant dense<0.000000e+00> : vector<8x384xf32>
    %9 = tpu.matmul %1, %8, %cst {dimension_numbers = #tpu.dot_dimension_numbers<[1], [0], [0], [1], [0, 0, 1, 1], [], []>} : vector<8x128xbf16>, vector<128x384xbf16>, vector<8x384xf32> -> vector<8x384xf32>
    %cst_3 = arith.constant dense<0.000000e+00> : vector<8x384xf32>
    %10 = tpu.matmul %4, %8, %cst_3 {dimension_numbers = #tpu.dot_dimension_numbers<[1], [0], [0], [1], [0, 0, 1, 1], [], []>} : vector<8x128xbf16>, vector<128x384xbf16>, vector<8x384xf32> -> vector<8x384xf32>
    %11 = arith.addf %9, %10 : vector<8x384xf32>
    %cst_4 = arith.constant dense<0.000000e+00> : vector<8x384xf32>
    %12 = tpu.matmul %7, %8, %cst_4 {dimension_numbers = #tpu.dot_dimension_numbers<[1], [0], [0], [1], [0, 0, 1, 1], [], []>} : vector<8x128xbf16>, vector<128x384xbf16>, vector<8x384xf32> -> vector<8x384xf32>
    %13 = arith.addf %11, %12 : vector<8x384xf32>
    %c0_5 = arith.constant 0 : index
    %c0_6 = arith.constant 0 : index
    %14 = vector.load %arg3[%c0_5, %c0_6] : memref<3x384xf32, #tpu.memory_space<vmem>>, vector<3x384xf32>
    %15 = vector.extract_strided_slice %14 {offsets = [0, 0], sizes = [1, 384], strides = [1, 1]} : vector<3x384xf32> to vector<1x384xf32>
    %16 = vector.extract_strided_slice %14 {offsets = [1, 0], sizes = [1, 384], strides = [1, 1]} : vector<3x384xf32> to vector<1x384xf32>
    %17 = vector.extract_strided_slice %14 {offsets = [2, 0], sizes = [1, 384], strides = [1, 1]} : vector<3x384xf32> to vector<1x384xf32>
    %18 = vector.broadcast %15 : vector<1x384xf32> to vector<8x384xf32>
    %19 = arith.subf %13, %18 : vector<8x384xf32>
    %20 = arith.mulf %19, %19 : vector<8x384xf32>
    %21 = vector.broadcast %16 : vector<1x384xf32> to vector<8x384xf32>
    %22 = arith.mulf %20, %21 : vector<8x384xf32>
    %23 = math.exp %22 : vector<8x384xf32>
    %24 = vector.broadcast %17 : vector<1x384xf32> to vector<8x384xf32>
    %25 = arith.mulf %23, %24 : vector<8x384xf32>
    %c0_7 = arith.constant 0 : index
    %c0_8 = arith.constant 0 : index
    %26 = vector.load %arg4[%c0_7, %c0_8] : memref<8x384xf32, #tpu.memory_space<vmem>>, vector<8x384xf32>
    tpu.vector_store %arg4[%c0_7, %c0_8], %25 {strides = array<i32>} : memref<8x384xf32, #tpu.memory_space<vmem>>, vector<8x384xf32>,
    return
  }
  func.func @transform_0(%arg0: i32) -> (i32, i32) {
    %c0_i32 = arith.constant 0 : i32
    %c0_i32_0 = arith.constant 0 : i32
    return %arg0, %c0_i32 : i32, i32
  }
  func.func @transform_1(%arg0: i32) -> (i32, i32) {
    %c0_i32 = arith.constant 0 : i32
    %c0_i32_0 = arith.constant 0 : i32
    %c0_i32_1 = arith.constant 0 : i32
    return %c0_i32, %c0_i32_0 : i32, i32
  }
  func.func @transform_2(%arg0: i32) -> (i32, i32) {
    %c0_i32 = arith.constant 0 : i32
    %c0_i32_0 = arith.constant 0 : i32
    %c0_i32_1 = arith.constant 0 : i32
    return %c0_i32, %c0_i32_0 : i32, i32
  }
  func.func @transform_3(%arg0: i32) -> (i32, i32) {
    %c0_i32 = arith.constant 0 : i32
    %c0_i32_0 = arith.constant 0 : i32
    return %arg0, %c0_i32 : i32, i32
  }
}

</mosaic_0001>

<llo_original>
// kernel: tpu_custom_call.1
$region0: #{tpu_custom_call.1}
  #allocation0 [shape = 'u32[]', space=smem, size = 0x4, offset = 0x4, fixed_abs, tag = 'smem constant byte address 0x4 - core index']
  #allocation1 [shape = 'u32[144,128]{1,0:T(1,128)}', space=vmem, size = 0x12000, scoped, tag = 'internal scratch']
  %s0 = inlined_call_operand.hbm [shape: f32[35,128], index: 0, kind: input, shape index: {}]
  %s1 = inlined_call_operand.hbm [shape: bf16[128,384], index: 1, kind: input, shape index: {}]
  %s2 = inlined_call_operand.hbm [shape: f32[3,384], index: 2, kind: input, shape index: {}]
  %s3 = inlined_call_operand.hbm [shape: f32[35,384], index: 3, kind: output, shape index: {}]
  %s4 = sld [smem:[#allocation0]]
  $region57: #{tpu_custom_call.1} parent=0
    _
  %s6 = ssub.s32 1, %s4
  %s7 = scalar_select 0, %s6, %s4
  $region1: #{tpu_custom_call.1} parent=0
    #allocation2 [shape = 'u8[8192]{0}', space=vmem, size = 0x2000, scoped, tag = 'input window, operand 0']
    #allocation3 [shape = 's32[2]{0}', space=sflag, size = 0x8, scoped, tag = 'scoped memory for tpu_custom_call.1']
    #allocation4 [shape = 's32[2]{0}', space=sflag, size = 0x8, scoped, tag = 'scoped memory for tpu_custom_call.1']
    #allocation5 [shape = 'u8[98304]{0}', space=vmem, size = 0x18000, scoped, tag = 'input window, operand 1, single buffered']
    #allocation6 [shape = 's32[1]{0}', space=sflag, size = 0x4, scoped, tag = 'scoped memory for tpu_custom_call.1']
    #allocation7 [shape = 'u8[6144]{0}', space=vmem, size = 0x1800, scoped, tag = 'input window, operand 2, single buffered']
    #allocation8 [shape = 'u8[24576]{0}', space=vmem, size = 0x6000, scoped, tag = 'output window, operand 0']
    %8 = vsyncpa [#allocation3], 0
    %s9 = scalar_lea.sflag [#allocation3], 1
    %10 = vsyncpa %s9, 0
    %11 = vsyncpa [#allocation6], 0
    %12 = vsyncpa [#allocation4], 0
    %s13 = scalar_lea.sflag [#allocation4], 1
    %14 = vsyncpa %s13, 0
    loop: start=0, step=1, limit=7
    $region2: #{tpu_custom_call.1} parent=1 // loop_pre_header
      _
    $region3: #{tpu_custom_call.1} parent=1 // loop_header
      %s16 = sphi 0, %s20
      %p17 = scmp.ge.s32.totalorder %s16, 7
      %s26 = sphi 0, %s28
      %s29 = sphi 0, %s26
      %s30 = sphi 0, %s29
      %s46 = sphi 0, %s30
      %s50 = sphi 0, %s50
      %s52 = sphi 0, %s50
      %s53 = sphi 0, %s52
      %s67 = sphi 0, %s53
      %s71 = sphi 0, %s71
      %s73 = sphi 0, %s71
      %s74 = sphi 0, %s73
      %s88 = sphi 0, %s74
      %s94 = sphi 0, %s96
      %s97 = sphi 0, %s94
      %s98 = sphi 0, %s97
      %s114 = sphi 0, %s98
    $region4: #{tpu_custom_call.1} parent=1 // loop_header_branch
      %19 = sbr.rel (%p17) target = $region8
    $region5: #{tpu_custom_call.1} parent=1 // loop_body
      %s21 = ssub.s32 %s16, 1
      %s22 = ssub.s32 %s16, 2
      %s23 = sadd.s32 %s16, 1
      %s24 = ssub.s32 %s16, %s23
      %p25 = scmp.eq.s32.totalorder %s24, 0
      %s27 = sadd.s32 %s26, 1
      %s28 = scalar_select %p25, %s26, %s27
      %p31 = pneg %p25
      %p32 = scmp.eq.s32.totalorder %s16, 4
      %p33 = por %p31, %p32
      %p34 = scmp.ne.s32.totalorder %s26, %s29
      %p35 = scmp.eq.s32.totalorder %s16, 0
      %p36 = por %p34, %p35
      %p37 = scmp.ne.s32.totalorder %s26, %s29
      %p38 = scmp.eq.s32.totalorder %s21, 4
      %p39 = por %p37, %p38
      %p40 = scmp.ne.s32.totalorder %s29, %s30
      %p41 = scmp.eq.s32.totalorder %s21, 0
      %p42 = por %p40, %p41
      %p43 = scmp.ne.s32.totalorder %s29, %s30
      %p44 = scmp.eq.s32.totalorder %s22, 4
      %p45 = por %p43, %p44
      %p47 = scmp.ne.s32.totalorder %s30, %s46
      %p48 = scmp.eq.s32.totalorder %s22, 0
      %p49 = por %p47, %p48
      %s51 = sadd.s32 %s50, 1
      %p54 = scmp.eq.s32.totalorder %s16, 4
      %p55 = scmp.ne.s32.totalorder %s50, %s52
      %p56 = scmp.eq.s32.totalorder %s16, 0
      %p57 = por %p55, %p56
      %p58 = scmp.ne.s32.totalorder %s50, %s52
      %p59 = scmp.eq.s32.totalorder %s21, 4
      %p60 = por %p58, %p59
      %p61 = scmp.ne.s32.totalorder %s52, %s53
      %p62 = scmp.eq.s32.totalorder %s21, 0
      %p63 = por %p61, %p62
      %p64 = scmp.ne.s32.totalorder %s52, %s53
      %p65 = scmp.eq.s32.totalorder %s22, 4
      %p66 = por %p64, %p65
      %p68 = scmp.ne.s32.totalorder %s53, %s67
      %p69 = scmp.eq.s32.totalorder %s22, 0
      %p70 = por %p68, %p69
      %s72 = sadd.s32 %s71, 1
      %p75 = scmp.eq.s32.totalorder %s16, 4
      %p76 = scmp.ne.s32.totalorder %s71, %s73
      %p77 = scmp.eq.s32.totalorder %s16, 0
      %p78 = por %p76, %p77
      %p79 = scmp.ne.s32.totalorder %s71, %s73
      %p80 = scmp.eq.s32.totalorder %s21, 4
      %p81 = por %p79, %p80
      %p82 = scmp.ne.s32.totalorder %s73, %s74
      %p83 = scmp.eq.s32.totalorder %s21, 0
      %p84 = por %p82, %p83
      %p85 = scmp.ne.s32.totalorder %s73, %s74
      %p86 = scmp.eq.s32.totalorder %s22, 4
      %p87 = por %p85, %p86
      %p89 = scmp.ne.s32.totalorder %s74, %s88
      %p90 = scmp.eq.s32.totalorder %s22, 0
      %p91 = por %p89, %p90
      %s92 = ssub.s32 %s16, %s23
      %p93 = scmp.eq.s32.totalorder %s92, 0
      %s95 = sadd.s32 %s94, 1
      %s96 = scalar_select %p93, %s94, %s95
      %p99 = pneg %p93
      %p100 = scmp.eq.s32.totalorder %s16, 4
      %p101 = por %p99, %p100
      %p102 = scmp.ne.s32.totalorder %s94, %s97
      %p103 = scmp.eq.s32.totalorder %s16, 0
      %p104 = por %p102, %p103
      %p105 = scmp.ne.s32.totalorder %s94, %s97
      %p106 = scmp.eq.s32.totalorder %s21, 4
      %p107 = por %p105, %p106
      %p108 = scmp.ne.s32.totalorder %s97, %s98
      %p109 = scmp.eq.s32.totalorder %s21, 0
      %p110 = por %p108, %p109
      %p111 = scmp.ne.s32.totalorder %s97, %s98
      %p112 = scmp.eq.s32.totalorder %s22, 4
      %p113 = por %p111, %p112
      %p115 = scmp.ne.s32.totalorder %s98, %s114
      %p116 = scmp.eq.s32.totalorder %s22, 0
      %p117 = por %p115, %p116
      %p118 = scmp.le.s32.totalorder 1, %s16
      %p119 = scmp.lt.s32.totalorder %s16, 6
      %p120 = pnand %p118, %p119
      %p121 = pneg %p120
      // Predicated region
      $region9: #{tpu_custom_call.1} parent=5 // pred_check
        _
      $region10: #{tpu_custom_call.1} parent=5 // pred_check_branch
        %123 = sbr.rel (%p120) target = $region12
      $region11: #{tpu_custom_call.1} parent=5 // pred_region
        %s124 = ssub.s32 %s16, 1
        // Predicated region
        $region13: #{tpu_custom_call.1} parent=11 // pred_check
          %p125 = pneg %p63
        $region14: #{tpu_custom_call.1} parent=11 // pred_check_branch
          %127 = sbr.rel (%p125) target = $region16
        $region15: #{tpu_custom_call.1} parent=11 // pred_region
          %s129 = ssub.s32 3072, 3072
          %130 = vsyncadd [#allocation6], %s129
          %s131 = sshll.u32 [#allocation5], 4
          %s132 = int_to_ptr.vmem [resolvable:$true] %s131
          %137 = dma.hbm_to_vmem [thread:$0]  %s1, 3072, %s132, [#allocation6], 192, 192, 12
        $region16: #{tpu_custom_call.1} parent=11 // pred_fallthru
          _
        // Predicated region
        $region17: #{tpu_custom_call.1} parent=11 // pred_check
          %p138 = pneg %p84
        $region18: #{tpu_custom_call.1} parent=11 // pred_check_branch
          %140 = sbr.rel (%p138) target = $region20
        $region19: #{tpu_custom_call.1} parent=11 // pred_region
          %s142 = ssub.s32 192, 192
          %143 = vsyncadd [#allocation6], %s142
          %s145 = sshll.u32 [#allocation7], 4
          %s146 = int_to_ptr.vmem [resolvable:$true] %s145
          %148 = dma.hbm_to_vmem [thread:$0]  %s2, 192, %s146, [#allocation6]
        $region20: #{tpu_custom_call.1} parent=11 // pred_fallthru
          _
      $region12: #{tpu_custom_call.1} parent=5 // pred_fallthru
        _
      %p149 = scmp.lt.s32.totalorder %s16, 5
      // Predicated region
      $region21: #{tpu_custom_call.1} parent=5 // pred_check
        %p150 = pneg %p149
      $region22: #{tpu_custom_call.1} parent=5 // pred_check_branch
        %152 = sbr.rel (%p150) target = $region24
      $region23: #{tpu_custom_call.1} parent=5 // pred_region
        // Predicated region
        $region25: #{tpu_custom_call.1} parent=23 // pred_check
          %p153 = pneg %p36
        $region26: #{tpu_custom_call.1} parent=23 // pred_check_branch
          %155 = sbr.rel (%p153) target = $region28
        $region27: #{tpu_custom_call.1} parent=23 // pred_region
          %s156 = sand.u32 %s26, 1
          %s157 = scalar_lea.sflag [#allocation3], %s156
          %s158 = sand.u32 %s26, 1
          %s159 = smul.addr %s158, 8
          %s160 = scalar_lea.vmem [#allocation2], %s159
          %s162 = ssub.s32 128, 128
          %163 = vsyncadd %s157, %s162
          %s164 = smul.addr %s16, 128
          %s165 = scalar_lea.hbm %s0, %s164
          %s167 = sshll.u32 %s160, 4
          %s168 = int_to_ptr.vmem [resolvable:$true] %s167
          %170 = dma.hbm_to_vmem [thread:$0]  %s165, 128, %s168, %s157
        $region28: #{tpu_custom_call.1} parent=23 // pred_fallthru
          _
      $region24: #{tpu_custom_call.1} parent=5 // pred_fallthru
        _
      %p171 = scmp.le.s32.totalorder 1, %s16
      %p172 = scmp.lt.s32.totalorder %s16, 6
      %p173 = pnand %p171, %p172
      %p174 = pneg %p173
      // Predicated region
      $region29: #{tpu_custom_call.1} parent=5 // pred_check
        _
      $region30: #{tpu_custom_call.1} parent=5 // pred_check_branch
        %176 = sbr.rel (%p173) target = $region32
      $region31: #{tpu_custom_call.1} parent=5 // pred_region
        %s177 = ssub.s32 %s16, 1
        %s178 = sand.u32 %s29, 1
        %s179 = scalar_lea.sflag [#allocation3], %s178
        %s180 = sand.u32 %s29, 1
        %s181 = smul.addr %s180, 8
        %s182 = scalar_lea.vmem [#allocation2], %s181
        // Predicated region
        $region33: #{tpu_custom_call.1} parent=31 // pred_check
          %p183 = pneg %p42
        $region34: #{tpu_custom_call.1} parent=31 // pred_check_branch
          %185 = sbr.rel (%p183) target = $region36
        $region35: #{tpu_custom_call.1} parent=31 // pred_region
          %186 = dma.done %s179, 128
        $region36: #{tpu_custom_call.1} parent=31 // pred_fallthru
          _
        // Predicated region
        $region37: #{tpu_custom_call.1} parent=31 // pred_check
          %p187 = pneg %p63
        $region38: #{tpu_custom_call.1} parent=31 // pred_check_branch
          %189 = sbr.rel (%p187) target = $region40
        $region39: #{tpu_custom_call.1} parent=31 // pred_region
          %190 = dma.done [#allocation6], 3072
        $region40: #{tpu_custom_call.1} parent=31 // pred_fallthru
          _
        // Predicated region
        $region41: #{tpu_custom_call.1} parent=31 // pred_check
          %p191 = pneg %p84
        $region42: #{tpu_custom_call.1} parent=31 // pred_check_branch
          %193 = sbr.rel (%p191) target = $region44
        $region43: #{tpu_custom_call.1} parent=31 // pred_region
          %194 = dma.done [#allocation6], 192
        $region44: #{tpu_custom_call.1} parent=31 // pred_fallthru
          _
        %s195 = sand.u32 %s29, 1
        %s196 = scalar_lea.sflag [#allocation3], %s195
        %s197 = sand.u32 %s29, 1
        %s198 = smul.addr %s197, 8
        %s199 = scalar_lea.vmem [#allocation2], %s198
        %p200 = pneg %p42
        %p201 = pneg %p39
        %p202 = pneg %p63
        %p203 = pneg %p60
        %p204 = pneg %p84
        %p205 = pneg %p81
        %p206 = pneg %p110
        %p207 = pneg %p107
        %s208 = sand.u32 %s97, 1
        %s209 = scalar_lea.sflag [#allocation4], %s208
        %s210 = sand.u32 %s97, 1
        %s211 = smul.addr %s210, 24
        %s212 = scalar_lea.vmem [#allocation8], %s211
        %v214 = vld [vmem:[%s182] sm:$0xff]
        %v215 = vpack.c.bf16 %v214, %v214
        %v216 = vunpack.c.l.bf16 %v215
        %v217 = vsub.f32 %v214, %v216
        %v218 = vpack.c.bf16 %v217, %v217
        %v219 = vunpack.c.l.bf16 %v218
        %v220 = vsub.f32 %v217, %v219
        %v221 = vpack.c.bf16 %v220, %v220
        %v222 = vld [vmem:[#allocation5] sm:$0xff]
        %v223 = vld [vmem:[#allocation5 + $0x8] sm:$0xf]
        %v224 = vld [vmem:[#allocation5 + $0xc] sm:$0xff]
        %v225 = vld [vmem:[#allocation5 + $0x14] sm:$0xf]
        %v226 = vld [vmem:[#allocation5 + $0x18] sm:$0xff]
        %v227 = vld [vmem:[#allocation5 + $0x20] sm:$0xf]
        %v228 = vld [vmem:[#allocation5 + $0x24] sm:$0xff]
        %v229 = vld [vmem:[#allocation5 + $0x2c] sm:$0xf]
        %v230 = vld [vmem:[#allocation5 + $0x30] sm:$0xff]
        %v231 = vld [vmem:[#allocation5 + $0x38] sm:$0xf]
        %v232 = vld [vmem:[#allocation5 + $0x3c] sm:$0xff]
        %v233 = vld [vmem:[#allocation5 + $0x44] sm:$0xf]
        %v234 = vld [vmem:[#allocation5 + $0x48] sm:$0xff]
        %v235 = vld [vmem:[#allocation5 + $0x50] sm:$0xf]
        %v236 = vld [vmem:[#allocation5 + $0x54] sm:$0xff]
        %v237 = vld [vmem:[#allocation5 + $0x5c] sm:$0xf]
        %v238 = vld [vmem:[#allocation5 + $0x60] sm:$0xff]
        %v239 = vld [vmem:[#allocation5 + $0x68] sm:$0xf]
        %v240 = vld [vmem:[#allocation5 + $0x6c] sm:$0xff]
        %v241 = vld [vmem:[#allocation5 + $0x74] sm:$0xf]
        %v242 = vld [vmem:[#allocation5 + $0x78] sm:$0xff]
        %v243 = vld [vmem:[#allocation5 + $0x80] sm:$0xf]
        %v244 = vld [vmem:[#allocation5 + $0x84] sm:$0xff]
        %v245 = vld [vmem:[#allocation5 + $0x8c] sm:$0xf]
        %v246 = vld [vmem:[#allocation5 + $0x90] sm:$0xff]
        %v247 = vld [vmem:[#allocation5 + $0x98] sm:$0xf]
        %v248 = vld [vmem:[#allocation5 + $0x9c] sm:$0xff]
        %v249 = vld [vmem:[#allocation5 + $0xa4] sm:$0xf]
        %v250 = vld [vmem:[#allocation5 + $0xa8] sm:$0xff]
        %v251 = vld [vmem:[#allocation5 + $0xb0] sm:$0xf]
        %v252 = vld [vmem:[#allocation5 + $0xb4] sm:$0xff]
        %v253 = vld [vmem:[#allocation5 + $0xbc] sm:$0xf]
        %v286 = vunpack.c.l.b16 %v222
        %v287 = vunpack.c.h.b16 %v222
        %v288 = vunpack.c.l.b16 %v223
        %v289 = vunpack.c.l.b16 %v224
        %v290 = vunpack.c.h.b16 %v224
        %v291 = vunpack.c.l.b16 %v225
        %v292 = vunpack.c.l.b16 %v226
        %v293 = vunpack.c.h.b16 %v226
        %v294 = vunpack.c.l.b16 %v227
        %v295 = vunpack.c.l.b16 %v228
        %v296 = vunpack.c.h.b16 %v228
        %v297 = vunpack.c.l.b16 %v229
        %v298 = vunpack.c.l.b16 %v230
        %v299 = vunpack.c.h.b16 %v230
        %v300 = vunpack.c.l.b16 %v231
        %v301 = vunpack.c.l.b16 %v232
        %v302 = vunpack.c.h.b16 %v232
        %v303 = vunpack.c.l.b16 %v233
        %v304 = vunpack.c.l.b16 %v234
        %v305 = vunpack.c.h.b16 %v234
        %v306 = vunpack.c.l.b16 %v235
        %v307 = vunpack.c.l.b16 %v236
        %v308 = vunpack.c.h.b16 %v236
        %v309 = vunpack.c.l.b16 %v237
        %v310 = vunpack.c.l.b16 %v238
        %v311 = vunpack.c.h.b16 %v238
        %v312 = vunpack.c.l.b16 %v239
        %v313 = vunpack.c.l.b16 %v240
        %v314 = vunpack.c.h.b16 %v240
        %v315 = vunpack.c.l.b16 %v241
        %v316 = vunpack.c.l.b16 %v242
        %v317 = vunpack.c.h.b16 %v242
        %v318 = vunpack.c.l.b16 %v243
        %v319 = vunpack.c.l.b16 %v244
        %v320 = vunpack.c.h.b16 %v244
        %v321 = vunpack.c.l.b16 %v245
        %v322 = vunpack.c.l.b16 %v246
        %v323 = vunpack.c.h.b16 %v246
        %v324 = vunpack.c.l.b16 %v247
        %v325 = vunpack.c.l.b16 %v248
        %v326 = vunpack.c.h.b16 %v248
        %v327 = vunpack.c.l.b16 %v249
        %v328 = vunpack.c.l.b16 %v250
        %v329 = vunpack.c.h.b16 %v250
        %v330 = vunpack.c.l.b16 %v251
        %v331 = vunpack.c.l.b16 %v252
        %v332 = vunpack.c.h.b16 %v252
        %v333 = vunpack.c.l.b16 %v253
        %v334 = vpack.c.b16 %v289, %v286
        %v335 = vpack.c.b16 %v290, %v287
        %v336 = vpack.c.b16 %v291, %v288
        %v337 = vpack.c.b16 %v295, %v292
        %v338 = vpack.c.b16 %v296, %v293
        %v339 = vpack.c.b16 %v297, %v294
        %v340 = vpack.c.b16 %v301, %v298
        %v341 = vpack.c.b16 %v302, %v299
        %v342 = vpack.c.b16 %v303, %v300
        %v343 = vpack.c.b16 %v307, %v304
        %v344 = vpack.c.b16 %v308, %v305
        %v345 = vpack.c.b16 %v309, %v306
        %v346 = vpack.c.b16 %v313, %v310
        %v347 = vpack.c.b16 %v314, %v311
        %v348 = vpack.c.b16 %v315, %v312
        %v349 = vpack.c.b16 %v319, %v316
        %v350 = vpack.c.b16 %v320, %v317
        %v351 = vpack.c.b16 %v321, %v318
        %v352 = vpack.c.b16 %v325, %v322
        %v353 = vpack.c.b16 %v326, %v323
        %v354 = vpack.c.b16 %v327, %v324
        %v355 = vpack.c.b16 %v331, %v328
        %v356 = vpack.c.b16 %v332, %v329
        %v357 = vpack.c.b16 %v333, %v330
        %382 = vmatprep.subr.bf16.mxu0 %v335
        %383 = vmatpush1.bf16.msra.mxu0 %v334
        %384 = vmatprep.subr.bf16.mxu0 %v338
        %385 = vmatpush1.bf16.msra.mxu0 %v337
        %386 = vmatprep.subr.bf16.mxu0 %v341
        %387 = vmatpush1.bf16.msra.mxu0 %v340
        %388 = vmatprep.subr.bf16.mxu0 %v344
        %389 = vmatpush1.bf16.msra.mxu0 %v343
        %390 = vmatprep.subr.bf16.mxu0 %v347
        %391 = vmatpush1.bf16.msra.mxu0 %v346
        %392 = vmatprep.subr.bf16.mxu0 %v350
        %393 = vmatpush1.bf16.msra.mxu0 %v349
        %394 = vmatprep.subr.bf16.mxu0 %v353
        %395 = vmatpush1.bf16.msra.mxu0 %v352
        %396 = vmatprep.subr.bf16.mxu0 %v356
        %397 = vmatpush1.bf16.msra.mxu0 %v355
        %398 = vmatprep.subr.bf16.mxu0 0
        %399 = vmatpush1.bf16.msra.mxu0 0
        %400 = vmatprep.subr.bf16.mxu0 0
        %401 = vmatpush1.bf16.msra.mxu0 0
        %402 = vmatprep.subr.bf16.mxu0 0
        %403 = vmatpush1.bf16.msra.mxu0 0
        %404 = vmatprep.subr.bf16.mxu0 0
        %405 = vmatpush1.bf16.msra.mxu0 0
        %406 = vmatprep.subr.bf16.mxu0 0
        %407 = vmatpush1.bf16.msra.mxu0 0
        %408 = vmatprep.subr.bf16.mxu0 0
        %409 = vmatpush1.bf16.msra.mxu0 0
        %410 = vmatprep.subr.bf16.mxu0 0
        %411 = vmatpush1.bf16.msra.mxu0 0
        %412 = vmatprep.subr.bf16.mxu0 0
        %413 = vmatpush1.bf16.msra.mxu0 0
        %414 = vmatprep.mubr.bf16.mxu0 0
        %415 = vmatmul.mubr.bf16.gmra.mrb[0].mxu0 %v218
        %v416 = vpop.f32.mrb[0].mxu0
        %v417 = vadd.f32 0.0, %v416
        %v418 = vpop.f32.mrb[0].mxu0
        %v419 = vadd.f32 0.0, %v418
        %v420 = vpop.f32.mrb[0].mxu0
        %v421 = vpop.f32.mrb[0].mxu0
        %422 = vdwg.mxu0
        %423 = vmatprep.subr.bf16.mxu0 0
        %424 = vmatpush1.bf16.msra.mxu0 %v336
        %425 = vmatprep.subr.bf16.mxu0 0
        %426 = vmatpush1.bf16.msra.mxu0 %v339
        %427 = vmatprep.subr.bf16.mxu0 0
        %428 = vmatpush1.bf16.msra.mxu0 %v342
        %429 = vmatprep.subr.bf16.mxu0 0
        %430 = vmatpush1.bf16.msra.mxu0 %v345
        %431 = vmatprep.subr.bf16.mxu0 0
        %432 = vmatpush1.bf16.msra.mxu0 %v348
        %433 = vmatprep.subr.bf16.mxu0 0
        %434 = vmatpush1.bf16.msra.mxu0 %v351
        %435 = vmatprep.subr.bf16.mxu0 0
        %436 = vmatpush1.bf16.msra.mxu0 %v354
        %437 = vmatprep.subr.bf16.mxu0 0
        %438 = vmatpush1.bf16.msra.mxu0 %v357
        %439 = vmatprep.subr.bf16.mxu0 0
        %440 = vmatpush1.bf16.msra.mxu0 0
        %441 = vmatprep.subr.bf16.mxu0 0
        %442 = vmatpush1.bf16.msra.mxu0 0
        %443 = vmatprep.subr.bf16.mxu0 0
        %444 = vmatpush1.bf16.msra.mxu0 0
        %445 = vmatprep.subr.bf16.mxu0 0
        %446 = vmatpush1.bf16.msra.mxu0 0
        %447 = vmatprep.subr.bf16.mxu0 0
        %448 = vmatpush1.bf16.msra.mxu0 0
        %449 = vmatprep.subr.bf16.mxu0 0
        %450 = vmatpush1.bf16.msra.mxu0 0
        %451 = vmatprep.subr.bf16.mxu0 0
        %452 = vmatpush1.bf16.msra.mxu0 0
        %453 = vmatprep.subr.bf16.mxu0 0
        %454 = vmatpush1.bf16.msra.mxu0 0
        %455 = vmatprep.mubr.bf16.mxu0 0
        %456 = vmatmul.mubr.bf16.gmra.mrb[0].mxu0 %v218
        %v457 = vpop.f32.mrb[0].mxu0
        %v458 = vadd.f32 0.0, %v457
        %v459 = vpop.f32.mrb[0].mxu0
        %v460 = vpop.f32.mrb[0].mxu0
        %v461 = vpop.f32.mrb[0].mxu0
        %462 = vdwg.mxu0
        %463 = vmatprep.subr.bf16.mxu0 %v335
        %464 = vmatpush1.bf16.msra.mxu0 %v334
        %465 = vmatprep.subr.bf16.mxu0 %v338
        %466 = vmatpush1.bf16.msra.mxu0 %v337
        %467 = vmatprep.subr.bf16.mxu0 %v341
        %468 = vmatpush1.bf16.msra.mxu0 %v340
        %469 = vmatprep.subr.bf16.mxu0 %v344
        %470 = vmatpush1.bf16.msra.mxu0 %v343
        %471 = vmatprep.subr.bf16.mxu0 %v347
        %472 = vmatpush1.bf16.msra.mxu0 %v346
        %473 = vmatprep.subr.bf16.mxu0 %v350
        %474 = vmatpush1.bf16.msra.mxu0 %v349
        %475 = vmatprep.subr.bf16.mxu0 %v353
        %476 = vmatpush1.bf16.msra.mxu0 %v352
        %477 = vmatprep.subr.bf16.mxu0 %v356
        %478 = vmatpush1.bf16.msra.mxu0 %v355
        %479 = vmatprep.subr.bf16.mxu0 0
        %480 = vmatpush1.bf16.msra.mxu0 0
        %481 = vmatprep.subr.bf16.mxu0 0
        %482 = vmatpush1.bf16.msra.mxu0 0
        %483 = vmatprep.subr.bf16.mxu0 0
        %484 = vmatpush1.bf16.msra.mxu0 0
        %485 = vmatprep.subr.bf16.mxu0 0
        %486 = vmatpush1.bf16.msra.mxu0 0
        %487 = vmatprep.subr.bf16.mxu0 0
        %488 = vmatpush1.bf16.msra.mxu0 0
        %489 = vmatprep.subr.bf16.mxu0 0
        %490 = vmatpush1.bf16.msra.mxu0 0
        %491 = vmatprep.subr.bf16.mxu0 0
        %492 = vmatpush1.bf16.msra.mxu0 0
        %493 = vmatprep.subr.bf16.mxu0 0
        %494 = vmatpush1.bf16.msra.mxu0 0
        %495 = vmatprep.mubr.bf16.mxu0 0
        %496 = vmatmul.mubr.bf16.gmra.mrb[0].mxu0 %v215
        %v497 = vpop.f32.mrb[0].mxu0
        %v498 = vadd.f32 %v417, %v497
        %v499 = vpop.f32.mrb[0].mxu0
        %v500 = vadd.f32 %v419, %v499
        %v501 = vpop.f32.mrb[0].mxu0
        %v502 = vpop.f32.mrb[0].mxu0
        %503 = vdwg.mxu0
        %504 = vmatprep.subr.bf16.mxu0 0
        %505 = vmatpush1.bf16.msra.mxu0 %v336
        %506 = vmatprep.subr.bf16.mxu0 0
        %507 = vmatpush1.bf16.msra.mxu0 %v339
        %508 = vmatprep.subr.bf16.mxu0 0
        %509 = vmatpush1.bf16.msra.mxu0 %v342
        %510 = vmatprep.subr.bf16.mxu0 0
        %511 = vmatpush1.bf16.msra.mxu0 %v345
        %512 = vmatprep.subr.bf16.mxu0 0
        %513 = vmatpush1.bf16.msra.mxu0 %v348
        %514 = vmatprep.subr.bf16.mxu0 0
        %515 = vmatpush1.bf16.msra.mxu0 %v351
        %516 = vmatprep.subr.bf16.mxu0 0
        %517 = vmatpush1.bf16.msra.mxu0 %v354
        %518 = vmatprep.subr.bf16.mxu0 0
        %519 = vmatpush1.bf16.msra.mxu0 %v357
        %520 = vmatprep.subr.bf16.mxu0 0
        %521 = vmatpush1.bf16.msra.mxu0 0
        %522 = vmatprep.subr.bf16.mxu0 0
        %523 = vmatpush1.bf16.msra.mxu0 0
        %524 = vmatprep.subr.bf16.mxu0 0
        %525 = vmatpush1.bf16.msra.mxu0 0
        %526 = vmatprep.subr.bf16.mxu0 0
        %527 = vmatpush1.bf16.msra.mxu0 0
        %528 = vmatprep.subr.bf16.mxu0 0
        %529 = vmatpush1.bf16.msra.mxu0 0
        %530 = vmatprep.subr.bf16.mxu0 0
        %531 = vmatpush1.bf16.msra.mxu0 0
        %532 = vmatprep.subr.bf16.mxu0 0
        %533 = vmatpush1.bf16.msra.mxu0 0
        %534 = vmatprep.subr.bf16.mxu0 0
        %535 = vmatpush1.bf16.msra.mxu0 0
        %536 = vmatprep.mubr.bf16.mxu0 0
        %537 = vmatmul.mubr.bf16.gmra.mrb[0].mxu0 %v215
        %v538 = vpop.f32.mrb[0].mxu0
        %v539 = vadd.f32 %v458, %v538
        %v540 = vpop.f32.mrb[0].mxu0
        %v541 = vpop.f32.mrb[0].mxu0
        %v542 = vpop.f32.mrb[0].mxu0
        %543 = vdwg.mxu0
        %544 = vmatprep.subr.bf16.mxu0 %v335
        %545 = vmatpush1.bf16.msra.mxu0 %v334
        %546 = vmatprep.subr.bf16.mxu0 %v338
        %547 = vmatpush1.bf16.msra.mxu0 %v337
        %548 = vmatprep.subr.bf16.mxu0 %v341
        %549 = vmatpush1.bf16.msra.mxu0 %v340
        %550 = vmatprep.subr.bf16.mxu0 %v344
        %551 = vmatpush1.bf16.msra.mxu0 %v343
        %552 = vmatprep.subr.bf16.mxu0 %v347
        %553 = vmatpush1.bf16.msra.mxu0 %v346
        %554 = vmatprep.subr.bf16.mxu0 %v350
        %555 = vmatpush1.bf16.msra.mxu0 %v349
        %556 = vmatprep.subr.bf16.mxu0 %v353
        %557 = vmatpush1.bf16.msra.mxu0 %v352
        %558 = vmatprep.subr.bf16.mxu0 %v356
        %559 = vmatpush1.bf16.msra.mxu0 %v355
        %560 = vmatprep.subr.bf16.mxu0 0
        %561 = vmatpush1.bf16.msra.mxu0 0
        %562 = vmatprep.subr.bf16.mxu0 0
        %563 = vmatpush1.bf16.msra.mxu0 0
        %564 = vmatprep.subr.bf16.mxu0 0
        %565 = vmatpush1.bf16.msra.mxu0 0
        %566 = vmatprep.subr.bf16.mxu0 0
        %567 = vmatpush1.bf16.msra.mxu0 0
        %568 = vmatprep.subr.bf16.mxu0 0
        %569 = vmatpush1.bf16.msra.mxu0 0
        %570 = vmatprep.subr.bf16.mxu0 0
        %571 = vmatpush1.bf16.msra.mxu0 0
        %572 = vmatprep.subr.bf16.mxu0 0
        %573 = vmatpush1.bf16.msra.mxu0 0
        %574 = vmatprep.subr.bf16.mxu0 0
        %575 = vmatpush1.bf16.msra.mxu0 0
        %576 = vmatprep.mubr.bf16.mxu0 0
        %577 = vmatmul.mubr.bf16.gmra.mrb[0].mxu0 %v221
        %v578 = vpop.f32.mrb[0].mxu0
        %v579 = vadd.f32 0.0, %v578
        %v580 = vpop.f32.mrb[0].mxu0
        %v581 = vadd.f32 0.0, %v580
        %v582 = vpop.f32.mrb[0].mxu0
        %v583 = vpop.f32.mrb[0].mxu0
        %584 = vdwg.mxu0
        %585 = vmatprep.subr.bf16.mxu0 0
        %586 = vmatpush1.bf16.msra.mxu0 %v336
        %587 = vmatprep.subr.bf16.mxu0 0
        %588 = vmatpush1.bf16.msra.mxu0 %v339
        %589 = vmatprep.subr.bf16.mxu0 0
        %590 = vmatpush1.bf16.msra.mxu0 %v342
        %591 = vmatprep.subr.bf16.mxu0 0
        %592 = vmatpush1.bf16.msra.mxu0 %v345
        %593 = vmatprep.subr.bf16.mxu0 0
        %594 = vmatpush1.bf16.msra.mxu0 %v348
        %595 = vmatprep.subr.bf16.mxu0 0
        %596 = vmatpush1.bf16.msra.mxu0 %v351
        %597 = vmatprep.subr.bf16.mxu0 0
        %598 = vmatpush1.bf16.msra.mxu0 %v354
        %599 = vmatprep.subr.bf16.mxu0 0
        %600 = vmatpush1.bf16.msra.mxu0 %v357
        %601 = vmatprep.subr.bf16.mxu0 0
        %602 = vmatpush1.bf16.msra.mxu0 0
        %603 = vmatprep.subr.bf16.mxu0 0
        %604 = vmatpush1.bf16.msra.mxu0 0
        %605 = vmatprep.subr.bf16.mxu0 0
        %606 = vmatpush1.bf16.msra.mxu0 0
        %607 = vmatprep.subr.bf16.mxu0 0
        %608 = vmatpush1.bf16.msra.mxu0 0
        %609 = vmatprep.subr.bf16.mxu0 0
        %610 = vmatpush1.bf16.msra.mxu0 0
        %611 = vmatprep.subr.bf16.mxu0 0
        %612 = vmatpush1.bf16.msra.mxu0 0
        %613 = vmatprep.subr.bf16.mxu0 0
        %614 = vmatpush1.bf16.msra.mxu0 0
        %615 = vmatprep.subr.bf16.mxu0 0
        %616 = vmatpush1.bf16.msra.mxu0 0
        %617 = vmatprep.mubr.bf16.mxu0 0
        %618 = vmatmul.mubr.bf16.gmra.mrb[0].mxu0 %v221
        %v619 = vpop.f32.mrb[0].mxu0
        %v620 = vadd.f32 0.0, %v619
        %v621 = vpop.f32.mrb[0].mxu0
        %v622 = vpop.f32.mrb[0].mxu0
        %v623 = vpop.f32.mrb[0].mxu0
        %624 = vdwg.mxu0
        %v625 = vadd.f32 %v498, %v579
        %v626 = vadd.f32 %v500, %v581
        %v627 = vadd.f32 %v539, %v620
        %v628 = vld [vmem:[#allocation7] sm:$0x77]
        %v629 = vld [vmem:[#allocation7 + $0x8] sm:$0x7]
        %v632 = vlaneseq
        %v633 = vshrl.u32 %v632, 7
        %v634 = vsub.s32 0, %v633
        %v635 = vrot.slane %v628, %v634
        %v636 = vlaneseq
        %v637 = vshrl.u32 %v636, 7
        %v638 = vsub.s32 4, %v637
        %v639 = vrot.slane %v628, %v638
        %v640 = vlaneseq
        %v641 = vshrl.u32 %v640, 7
        %v642 = vsub.s32 0, %v641
        %v643 = vrot.slane %v629, %v642
        %v647 = vlaneseq
        %v648 = vshrl.u32 %v647, 7
        %v649 = vsub.s32 0, %v648
        %v650 = vrot.slane %v635, %v649
        %v651 = vlaneseq
        %v652 = vshrl.u32 %v651, 7
        %v653 = vsub.s32 0, %v652
        %v654 = vrot.slane %v639, %v653
        %v655 = vlaneseq
        %v656 = vshrl.u32 %v655, 7
        %v657 = vsub.s32 0, %v656
        %v658 = vrot.slane %v643, %v657
        %v659 = vsub.f32 %v625, %v650
        %v660 = vsub.f32 %v626, %v654
        %v661 = vsub.f32 %v627, %v658
        %v662 = vmul.f32 %v659, %v659
        %v663 = vmul.f32 %v660, %v660
        %v664 = vmul.f32 %v661, %v661
        %v665 = vlaneseq
        %v666 = vshrl.u32 %v665, 7
        %v667 = vsub.s32 1, %v666
        %v668 = vrot.slane %v628, %v667
        %v669 = vlaneseq
        %v670 = vshrl.u32 %v669, 7
        %v671 = vsub.s32 5, %v670
        %v672 = vrot.slane %v628, %v671
        %v673 = vlaneseq
        %v674 = vshrl.u32 %v673, 7
        %v675 = vsub.s32 1, %v674
        %v676 = vrot.slane %v629, %v675
        %v680 = vlaneseq
        %v681 = vshrl.u32 %v680, 7
        %v682 = vsub.s32 1, %v681
        %v683 = vrot.slane %v668, %v682
        %v684 = vlaneseq
        %v685 = vshrl.u32 %v684, 7
        %v686 = vsub.s32 1, %v685
        %v687 = vrot.slane %v672, %v686
        %v688 = vlaneseq
        %v689 = vshrl.u32 %v688, 7
        %v690 = vsub.s32 1, %v689
        %v691 = vrot.slane %v676, %v690
        %v692 = vmul.f32 %v662, %v683
        %v693 = vmul.f32 %v663, %v687
        %v694 = vmul.f32 %v664, %v691
        %v695 = vmul.f32 %v692, 1.442695
        %v696 = vpow.pop %v695
        %v697 = vmul.f32 %v693, 1.442695
        %v698 = vpow.pop %v697
        %v699 = vmul.f32 %v694, 1.442695
        %v700 = vpow.pop %v699
        %v701 = vlaneseq
        %v702 = vshrl.u32 %v701, 7
        %v703 = vsub.s32 2, %v702
        %v704 = vrot.slane %v628, %v703
        %v705 = vlaneseq
        %v706 = vshrl.u32 %v705, 7
        %v707 = vsub.s32 6, %v706
        %v708 = vrot.slane %v628, %v707
        %v709 = vlaneseq
        %v710 = vshrl.u32 %v709, 7
        %v711 = vsub.s32 2, %v710
        %v712 = vrot.slane %v629, %v711
        %v716 = vlaneseq
        %v717 = vshrl.u32 %v716, 7
        %v718 = vsub.s32 2, %v717
        %v719 = vrot.slane %v704, %v718
        %v720 = vlaneseq
        %v721 = vshrl.u32 %v720, 7
        %v722 = vsub.s32 2, %v721
        %v723 = vrot.slane %v708, %v722
        %v724 = vlaneseq
        %v725 = vshrl.u32 %v724, 7
        %v726 = vsub.s32 2, %v725
        %v727 = vrot.slane %v712, %v726
        %v728 = vmul.f32 %v696, %v719
        %v729 = vmul.f32 %v698, %v723
        %v730 = vmul.f32 %v700, %v727
        %731 = vst [vmem:[%s212] sm:$0xff] %v728
        %732 = vst [vmem:[%s212 + $0x8] sm:$0xff] %v729
        %733 = vst [vmem:[%s212 + $0x10] sm:$0xff] %v730
        %s734 = sand.u32 %s97, 1
        %s735 = scalar_lea.sflag [#allocation4], %s734
        %s736 = sand.u32 %s97, 1
        %s737 = smul.addr %s736, 24
        %s738 = scalar_lea.vmem [#allocation8], %s737
        // Predicated region
        $region45: #{tpu_custom_call.1} parent=31 // pred_check
          %p739 = pneg %p107
        $region46: #{tpu_custom_call.1} parent=31 // pred_check_branch
          %741 = sbr.rel (%p739) target = $region48
        $region47: #{tpu_custom_call.1} parent=31 // pred_region
          %s743 = ssub.s32 384, 384
          %744 = vsyncadd %s735, %s743
          %s745 = smul.addr %s21, 3
          %s746 = smul.addr %s745, 128
          %s747 = scalar_lea.hbm %s3, %s746
          %s749 = sshll.u32 %s738, 4
          %s750 = int_to_ptr.vmem [resolvable:$true] %s749
          %752 = dma.vmem_to_hbm [thread:$0]  %s750, 384, %s747, %s735
        $region48: #{tpu_custom_call.1} parent=31 // pred_fallthru
          _
      $region32: #{tpu_custom_call.1} parent=5 // pred_fallthru
        _
      %p753 = scmp.le.s32.totalorder 2, %s16
      // Predicated region
      $region49: #{tpu_custom_call.1} parent=5 // pred_check
        %p754 = pneg %p753
      $region50: #{tpu_custom_call.1} parent=5 // pred_check_branch
        %756 = sbr.rel (%p754) target = $region52
      $region51: #{tpu_custom_call.1} parent=5 // pred_region
        %s757 = ssub.s32 %s16, 2
        // Predicated region
        $region53: #{tpu_custom_call.1} parent=51 // pred_check
          %p758 = pneg %p113
        $region54: #{tpu_custom_call.1} parent=51 // pred_check_branch
          %760 = sbr.rel (%p758) target = $region56
        $region55: #{tpu_custom_call.1} parent=51 // pred_region
          %s761 = sand.u32 %s98, 1
          %s762 = scalar_lea.sflag [#allocation4], %s761
          %s763 = sand.u32 %s98, 1
          %s764 = smul.addr %s763, 24
          %s765 = scalar_lea.vmem [#allocation8], %s764
          %766 = dma.done %s762, 384
        $region56: #{tpu_custom_call.1} parent=51 // pred_fallthru
          _
      $region52: #{tpu_custom_call.1} parent=5 // pred_fallthru
        _
    $region6: #{tpu_custom_call.1} parent=1 // loop_footer
      %s20 = sadd.s32 1, %s16
    $region7: #{tpu_custom_call.1} parent=1 // loop_footer_branch
      %15 = sbr.rel target = $region3
    $region8: #{tpu_custom_call.1} parent=1 // loop_exit
      _
    %767 = vsyncpa [#allocation3], 1
    %s768 = scalar_lea.sflag [#allocation3], 1
    %769 = vsyncpa %s768, 1
    %770 = vsyncpa [#allocation6], 1
    %771 = vsyncpa [#allocation4], 1
    %s772 = scalar_lea.sflag [#allocation4], 1
    %773 = vsyncpa %s772, 1

</llo_original>
